<compile_context>
chip_gen: v7x
topology: tpu7x:2x2x1
jax: 0.10.0
libtpu: 0.0.40
codegen_flags: <defaults>
</compile_context>

<pallas_src>
import functools
import math
from collections import namedtuple

import jax
import jax.numpy as jnp
from jax.experimental import pallas as pl
from jax.experimental.pallas import tpu as pltpu


def _round_up(n, m):
    return ((n + m - 1) // m) * m


_TpuConfig = namedtuple("_TpuConfig",
                        "gen vmem_cap lane_align default_tile_m num_cores")


@functools.lru_cache(maxsize=1)
def _tpu_config():
    """Best-effort hardware query with conservative fallbacks."""
    kind = ""
    try:
        kind = jax.devices()[0].device_kind.lower()
    except Exception:
        pass
    if "v7" in kind:
        gen = 7
    elif "v6" in kind:
        gen = 6
    elif "v5" in kind:
        gen = 5
    else:
        gen = 6
    vmem_cap = None
    try:
        vmem_cap = int(getattr(pltpu.get_tpu_info(), "vmem_capacity_bytes", 0)) or None
    except Exception:
        vmem_cap = None
    if vmem_cap is None:
        vmem_cap = (64 << 20) if gen >= 7 else (128 << 20)
    # 256-alignment feeds the 2x256x256 MXU on v6e/v7x; 128 is optimal on v5e.
    lane_align = 128 if gen <= 5 else 256
    # Compute roofline needs roughly 240 (v5e) / 650 (v6e) / 650-per-TC (v7x)
    # rows of x per streamed weight pass.
    default_tile_m = {5: 256, 6: 1024, 7: 768}.get(gen, 512)
    num_cores = 2 if gen >= 7 else 1
    return _TpuConfig(gen, vmem_cap, lane_align, default_tile_m, num_cores)


# ---------------------------------------------------------------------------
# Kernels.  Grid = (M tiles [parallel], d_ff tiles [arbitrary/reduction]).
# Zero padding of x / W1 / b1 / W2 / b2 is exact for this FFN: padded hidden
# columns are relu(0 + 0) = 0 and contribute nothing to the second matmul.
# ---------------------------------------------------------------------------
def _ffn_kernel_scratch(x_ref, w1_ref, b1_ref, w2_ref, b2_ref, o_ref, acc_ref):
    """Non-f32 output: accumulate in an f32 VMEM scratch, cast at the end."""
    j = pl.program_id(1)

    @pl.when(j == 0)
    def _():
        acc_ref[...] = jnp.zeros_like(acc_ref)

    h = jnp.dot(x_ref[...], w1_ref[...], preferred_element_type=jnp.float32)
    h = jnp.maximum(h + b1_ref[...], 0.0)
    acc_ref[...] += jnp.dot(h.astype(w2_ref.dtype), w2_ref[...],
                            preferred_element_type=jnp.float32)

    # TODO(synk): training-mode dropout (pltpu.prng_random_bits masking) is not
    # implemented; Dropout is identity at inference.

    @pl.when(j == pl.num_programs(1) - 1)
    def _():
        o_ref[...] = jnp.maximum(acc_ref[...] + b2_ref[...], 0.0).astype(o_ref.dtype)


def _ffn_kernel_inplace(x_ref, w1_ref, b1_ref, w2_ref, b2_ref, o_ref):
    """f32 output: accumulate directly into the resident output block
    (drops the tile_m*d_model_p*4 B scratch -- helps v7x's 64 MiB VMEM)."""
    j = pl.program_id(1)

    @pl.when(j == 0)
    def _():
        o_ref[...] = jnp.zeros_like(o_ref)

    h = jnp.dot(x_ref[...], w1_ref[...], preferred_element_type=jnp.float32)
    h = jnp.maximum(h + b1_ref[...], 0.0)
    o_ref[...] += jnp.dot(h.astype(w2_ref.dtype), w2_ref[...],
                          preferred_element_type=jnp.float32)

    @pl.when(j == pl.num_programs(1) - 1)
    def _():
        o_ref[...] = jnp.maximum(o_ref[...] + b2_ref[...], 0.0)


# ---------------------------------------------------------------------------
# Parameter preparation -- done ONCE at load time (hoisted out of the call).
# ---------------------------------------------------------------------------
def prepare_params(w1, b1, w2, b2, *, compute_dtype=None, tile_ff=None):
    """Cast + pad the weights once.  Weights stored as (in_features, out_features)."""
    cfg = _tpu_config()
    if compute_dtype is None:
        compute_dtype = w1.dtype
    d_model, d_ff = w1.shape
    assert w2.shape == (d_ff, d_model)
    lane = cfg.lane_align

    d_model_p = _round_up(d_model, lane)
    if tile_ff is None:
        tile_ff = 512
    tile_ff = _round_up(min(tile_ff, _round_up(d_ff, lane)), lane)
    d_ff_p = _round_up(d_ff, tile_ff)       # grid over d_ff divides exactly

    def pad2d(a, rows, cols):
        pr, pc = rows - a.shape[0], cols - a.shape[1]
        return jnp.pad(a, ((0, pr), (0, pc))) if (pr or pc) else a

    return dict(
        w1=pad2d(w1.astype(compute_dtype), d_model_p, d_ff_p),
        b1=pad2d(b1.astype(jnp.float32).reshape(1, -1), 1, d_ff_p),
        w2=pad2d(w2.astype(compute_dtype), d_ff_p, d_model_p),
        b2=pad2d(b2.astype(jnp.float32).reshape(1, -1), 1, d_model_p),
        d_model=d_model, d_ff=d_ff, d_model_p=d_model_p, d_ff_p=d_ff_p,
        tile_ff=tile_ff, compute_dtype=compute_dtype,
    )


# ---------------------------------------------------------------------------
# Forward call.
# ---------------------------------------------------------------------------
def feed_forward(x, params, *, tile_m=None, weight_buffer_count=None):
    """x: (..., d_model).  Returns same shape/dtype as x."""
    cfg = _tpu_config()
    *lead, d_model = x.shape
    assert d_model == params["d_model"], "d_model mismatch"
    out_dtype = x.dtype
    compute_dtype = params["compute_dtype"]
    cbytes = jnp.dtype(compute_dtype).itemsize
    obytes = jnp.dtype(out_dtype).itemsize

    d_model_p = params["d_model_p"]
    d_ff_p = params["d_ff_p"]
    tile_ff = params["tile_ff"]

    M = math.prod(lead) if lead else 1
    sub = max(8, 32 // cbytes)                  # f32: 8 rows/sublane, bf16: 16
    if tile_m is None:
        tile_m = cfg.default_tile_m
    tile_m = max(sub, _round_up(min(tile_m, _round_up(M, sub)), sub))

    # v7x megacore: guarantee >= num_cores tiles on the parallel M axis.
    while cfg.num_cores > 1 and tile_m > sub and pl.cdiv(M, tile_m) < cfg.num_cores:
        tile_m = max(sub, _round_up(tile_m // 2, sub))

    accumulate_in_out = (out_dtype == jnp.float32)
    nbuf_w = weight_buffer_count if weight_buffer_count else 2

    def est_bytes(tm, tf):
        return (2 * tm * d_model_p * cbytes                       # x blocks
                + nbuf_w * d_model_p * tf * cbytes                # W1 blocks
                + nbuf_w * tf * d_model_p * cbytes                # W2 blocks
                + 2 * 8 * tf * 4 + 2 * 8 * d_model_p * 4          # biases (padded)
                + 2 * tm * d_model_p * obytes                     # out blocks
                + (0 if accumulate_in_out else tm * d_model_p * 4)  # acc scratch
                + tm * tf * 4 + tm * tf * cbytes)                 # hidden h + cast

    # Fit tiles into physical VMEM with headroom; shrink tile_ff first (does
    # not hurt weight-stream arithmetic intensity), then tile_m.
    budget = int(0.80 * cfg.vmem_cap)
    while (est_bytes(tile_m, tile_ff) > budget and tile_ff > 128
           and (tile_ff // 2) % 128 == 0):
        tile_ff //= 2
    while est_bytes(tile_m, tile_ff) > budget and tile_m > sub:
        tile_m = max(sub, _round_up(tile_m // 2, sub))
    # TODO(synk): for very large d_model the un-tiled d_model axis alone can
    # exceed VMEM; that case needs a second output grid axis over d_model.

    Mp = _round_up(M, tile_m)
    grid_m = Mp // tile_m
    grid = (grid_m, d_ff_p // tile_ff)

    # Per-call activation cast + pad (weights were prepared once).
    x2d = x.reshape(M, d_model).astype(compute_dtype)
    pr, pc = Mp - M, d_model_p - d_model
    if pr or pc:
        x2d = jnp.pad(x2d, ((0, pr), (0, pc)))

    est = est_bytes(tile_m, tile_ff)
    vmem_limit = int(min(max(int(1.25 * est), 32 << 20), int(0.9 * cfg.vmem_cap)))

    cost = pl.CostEstimate(
        flops=int(4 * Mp * d_model_p * d_ff_p),
        transcendentals=0,
        bytes_accessed=int(Mp * d_model_p * (cbytes + obytes)            # x in, y out
                           + grid_m * (2 * d_model_p * d_ff_p * cbytes   # W1+W2 per M tile
                                       + d_ff_p * 4)                     # b1 per M tile
                           + d_model_p * 4),                             # b2 once
    )

    def _wspec(shape, index_map):
        if weight_buffer_count:
            return pl.BlockSpec(shape, index_map,
                                pipeline_mode=pl.Buffered(weight_buffer_count))
        return pl.BlockSpec(shape, index_map)

    kernel = _ffn_kernel_inplace if accumulate_in_out else _ffn_kernel_scratch
    scratch = ([] if accumulate_in_out
               else [pltpu.VMEM((tile_m, d_model_p), jnp.float32)])

    out2d = pl.pallas_call(
        kernel,
        out_shape=jax.ShapeDtypeStruct((Mp, d_model_p), out_dtype),
        grid_spec=pltpu.PrefetchScalarGridSpec(
            num_scalar_prefetch=0,
            grid=grid,
            in_specs=[
                pl.BlockSpec((tile_m, d_model_p), lambda i, j: (i, 0)),   # x
                _wspec((d_model_p, tile_ff), lambda i, j: (0, j)),        # W1
                pl.BlockSpec((1, tile_ff), lambda i, j: (0, j)),          # b1
                _wspec((tile_ff, d_model_p), lambda i, j: (j, 0)),        # W2
                pl.BlockSpec((1, d_model_p), lambda i, j: (0, 0)),        # b2
            ],
            out_specs=pl.BlockSpec((tile_m, d_model_p), lambda i, j: (i, 0)),
            scratch_shapes=scratch,
        ),
        compiler_params=pltpu.CompilerParams(
            dimension_semantics=("parallel", "arbitrary"),
            vmem_limit_bytes=vmem_limit),
        cost_estimate=cost,
    )(x2d, params["w1"], params["b1"], params["w2"], params["b2"])

    return out2d[:M, :d_model].reshape(*lead, d_model).astype(out_dtype)


# ---------------------------------------------------------------------------
# Init + reference + self-test.
# ---------------------------------------------------------------------------
def init_params(key, d_model, d_ff, dtype=jnp.float32):
    """Mimics nn.Linear default init (uniform +/- 1/sqrt(fan_in))."""
    k1, k2, k3, k4 = jax.random.split(key, 4)
    bound1 = 1.0 / math.sqrt(d_model)
    bound2 = 1.0 / math.sqrt(d_ff)
    w1 = jax.random.uniform(k1, (d_model, d_ff), dtype, -bound1, bound1)
    b1 = jax.random.uniform(k2, (d_ff,), dtype, -bound1, bound1)
    w2 = jax.random.uniform(k3, (d_ff, d_model), dtype, -bound2, bound2)
    b2 = jax.random.uniform(k4, (d_model,), dtype, -bound2, bound2)
    return w1, b1, w2, b2


def feed_forward_ref(x, w1, b1, w2, b2):
    h = jnp.maximum(x @ w1 + b1, 0.0)
    y = jnp.maximum(h @ w2 + b2, 0.0)
    return y.astype(x.dtype)


if __name__ == "__main__":
    key = jax.random.PRNGKey(0)

    # case 1: small module-sized shapes, f32 compute (in-place accumulation path)
    batch, seq, d_model, d_ff = 2, 8, 32, 64
    key, kx, kp = jax.random.split(key, 3)
    x = jax.random.normal(kx, (batch, seq, d_model), jnp.float32)
    w1, b1, w2, b2 = init_params(kp, d_model, d_ff)
    params = prepare_params(w1, b1, w2, b2)            # pad/cast hoisted out of call
    out = jax.block_until_ready(feed_forward(x, params))
    ref = feed_forward_ref(x, w1, b1, w2, b2)
    assert out.shape == x.shape and out.dtype == x.dtype
    assert jnp.allclose(out, ref, atol=1e-5, rtol=1e-5), "case1: f32 mismatch"

    # case 2: multi-tile grid + bf16 compute (f32 accumulation into output)
    batch, seq, d_model, d_ff = 2, 256, 256, 512
    key, kx, kp = jax.random.split(key, 3)
    x = jax.random.normal(kx, (batch, seq, d_model), jnp.float32)
    w1, b1, w2, b2 = init_params(kp, d_model, d_ff)
    params = prepare_params(w1, b1, w2, b2, compute_dtype=jnp.bfloat16)
    out = jax.block_until_ready(feed_forward(x, params, tile_m=128))
    bf = jnp.bfloat16
    ref = feed_forward_ref(x.astype(bf).astype(jnp.float32),
                           w1.astype(bf).astype(jnp.float32), b1,
                           w2.astype(bf).astype(jnp.float32), b2)
    assert out.shape == x.shape and out.dtype == x.dtype
    assert jnp.allclose(out, ref, atol=3e-2, rtol=3e-2), "case2: bf16 mismatch"

    # case 3: bf16 output dtype exercises the scratch-accumulator kernel path
    batch, seq, d_model, d_ff = 2, 16, 64, 128
    key, kx, kp = jax.random.split(key, 3)
    x = jax.random.normal(kx, (batch, seq, d_model), jnp.bfloat16)
    w1, b1, w2, b2 = init_params(kp, d_model, d_ff)
    params = prepare_params(w1, b1, w2, b2, compute_dtype=jnp.float32)
    out = jax.block_until_ready(feed_forward(x, params))
    ref = feed_forward_ref(x.astype(jnp.float32), w1, b1, w2, b2)
    assert out.shape == x.shape and out.dtype == x.dtype
    assert jnp.allclose(out.astype(jnp.float32), ref, atol=3e-2, rtol=3e-2), \
        "case3: bf16-output mismatch"

    print("KERNEL_OK")
</pallas_src>

<mosaic_0001>
module attributes {stable_mosaic.version = 11 : i64} {
  func.func @_ffn_kernel_inplace(%arg0: i32, %arg1: i32, %arg2: memref<16x256xf32, #tpu.memory_space<vmem>>, %arg3: memref<256x256xf32, #tpu.memory_space<vmem>>, %arg4: memref<1x256xf32, #tpu.memory_space<vmem>>, %arg5: memref<256x256xf32, #tpu.memory_space<vmem>>, %arg6: memref<1x256xf32, #tpu.memory_space<vmem>>, %arg7: memref<16x256xf32, #tpu.memory_space<vmem>>) attributes {dimension_semantics = [#tpu.dimension_semantics<parallel>, #tpu.dimension_semantics<arbitrary>], iteration_bounds = array<i64: 1, 1>, scalar_prefetch = 0 : i64, scratch_operands = 0 : i64, tpu.core_type = #tpu.core_type<tc>, window_params = [{transform_indices = @transform_0, window_bounds = array<i64: 16, 256>}, {transform_indices = @transform_1, window_bounds = array<i64: 256, 256>}, {transform_indices = @transform_2, window_bounds = array<i64: 1, 256>}, {transform_indices = @transform_3, window_bounds = array<i64: 256, 256>}, {pipeline_mode = #tpu.pipeline_mode<synchronous>, transform_indices = @transform_4, window_bounds = array<i64: 1, 256>}, {transform_indices = @transform_5, window_bounds = array<i64: 16, 256>}]} {
    %c0_i32 = arith.constant 0 : i32
    %0 = arith.cmpi eq, %arg1, %c0_i32 : i32
    %1 = arith.extui %0 : i1 to i32
    %c0_i32_0 = arith.constant 0 : i32
    %2 = arith.cmpi ne, %1, %c0_i32_0 : i32
    scf.if %2 {
      %cst_16 = arith.constant 0.000000e+00 : f32
      %19 = vector.broadcast %cst_16 : f32 to vector<16x256xf32>
      %c0_17 = arith.constant 0 : index
      %c0_18 = arith.constant 0 : index
      %20 = vector.load %arg7[%c0_17, %c0_18] : memref<16x256xf32, #tpu.memory_space<vmem>>, vector<16x256xf32>
      tpu.vector_store %arg7[%c0_17, %c0_18], %19 {strides = array<i32>} : memref<16x256xf32, #tpu.memory_space<vmem>>, vector<16x256xf32>,
    } else {
    }
    %c0 = arith.constant 0 : index
    %c0_1 = arith.constant 0 : index
    %3 = vector.load %arg2[%c0, %c0_1] : memref<16x256xf32, #tpu.memory_space<vmem>>, vector<16x256xf32>
    %c0_2 = arith.constant 0 : index
    %c0_3 = arith.constant 0 : index
    %4 = vector.load %arg3[%c0_2, %c0_3] : memref<256x256xf32, #tpu.memory_space<vmem>>, vector<256x256xf32>
    %cst = arith.constant dense<0.000000e+00> : vector<16x256xf32>
    %5 = tpu.matmul %3, %4, %cst {dimension_numbers = #tpu.dot_dimension_numbers<[1], [0], [0], [1], [0, 0, 1, 1], [], []>} : vector<16x256xf32>, vector<256x256xf32>, vector<16x256xf32> -> vector<16x256xf32>
    %c0_4 = arith.constant 0 : index
    %c0_5 = arith.constant 0 : index
    %6 = vector.load %arg4[%c0_4, %c0_5] : memref<1x256xf32, #tpu.memory_space<vmem>>, vector<1x256xf32>
    %7 = vector.broadcast %6 : vector<1x256xf32> to vector<16x256xf32>
    %8 = arith.addf %5, %7 : vector<16x256xf32>
    %cst_6 = arith.constant 0.000000e+00 : f32
    %9 = vector.broadcast %cst_6 : f32 to vector<16x256xf32>
    %10 = arith.maximumf %8, %9 : vector<16x256xf32>
    %c0_7 = arith.constant 0 : index
    %c0_8 = arith.constant 0 : index
    %11 = vector.load %arg7[%c0_7, %c0_8] : memref<16x256xf32, #tpu.memory_space<vmem>>, vector<16x256xf32>
    %c0_9 = arith.constant 0 : index
    %c0_10 = arith.constant 0 : index
    %12 = vector.load %arg5[%c0_9, %c0_10] : memref<256x256xf32, #tpu.memory_space<vmem>>, vector<256x256xf32>
    %cst_11 = arith.constant dense<0.000000e+00> : vector<16x256xf32>
    %13 = tpu.matmul %10, %12, %cst_11 {dimension_numbers = #tpu.dot_dimension_numbers<[1], [0], [0], [1], [0, 0, 1, 1], [], []>} : vector<16x256xf32>, vector<256x256xf32>, vector<16x256xf32> -> vector<16x256xf32>
    %14 = arith.addf %11, %13 : vector<16x256xf32>
    %c0_12 = arith.constant 0 : index
    %c0_13 = arith.constant 0 : index
    %15 = vector.load %arg7[%c0_12, %c0_13] : memref<16x256xf32, #tpu.memory_space<vmem>>, vector<16x256xf32>
    tpu.vector_store %arg7[%c0_12, %c0_13], %14 {strides = array<i32>} : memref<16x256xf32, #tpu.memory_space<vmem>>, vector<16x256xf32>,
    %c0_i32_14 = arith.constant 0 : i32
    %16 = arith.cmpi eq, %arg1, %c0_i32_14 : i32
    %17 = arith.extui %16 : i1 to i32
    %c0_i32_15 = arith.constant 0 : i32
    %18 = arith.cmpi ne, %17, %c0_i32_15 : i32
    scf.if %18 {
      %c0_16 = arith.constant 0 : index
      %c0_17 = arith.constant 0 : index
      %19 = vector.load %arg7[%c0_16, %c0_17] : memref<16x256xf32, #tpu.memory_space<vmem>>, vector<16x256xf32>
      %c0_18 = arith.constant 0 : index
      %c0_19 = arith.constant 0 : index
      %20 = vector.load %arg6[%c0_18, %c0_19] : memref<1x256xf32, #tpu.memory_space<vmem>>, vector<1x256xf32>
      %21 = vector.broadcast %20 : vector<1x256xf32> to vector<16x256xf32>
      %22 = arith.addf %19, %21 : vector<16x256xf32>
      %cst_20 = arith.constant 0.000000e+00 : f32
      %23 = vector.broadcast %cst_20 : f32 to vector<16x256xf32>
      %24 = arith.maximumf %22, %23 : vector<16x256xf32>
      %c0_21 = arith.constant 0 : index
      %c0_22 = arith.constant 0 : index
      %25 = vector.load %arg7[%c0_21, %c0_22] : memref<16x256xf32, #tpu.memory_space<vmem>>, vector<16x256xf32>
      tpu.vector_store %arg7[%c0_21, %c0_22], %24 {strides = array<i32>} : memref<16x256xf32, #tpu.memory_space<vmem>>, vector<16x256xf32>,
    } else {
    }
    return
  }
  func.func @transform_0(%arg0: i32, %arg1: i32) -> (i32, i32) {
    %c0_i32 = arith.constant 0 : i32
    %c0_i32_0 = arith.constant 0 : i32
    return %arg0, %c0_i32 : i32, i32
  }
  func.func @transform_1(%arg0: i32, %arg1: i32) -> (i32, i32) {
    %c0_i32 = arith.constant 0 : i32
    %c0_i32_0 = arith.constant 0 : i32
    return %c0_i32, %arg1 : i32, i32
  }
  func.func @transform_2(%arg0: i32, %arg1: i32) -> (i32, i32) {
    %c0_i32 = arith.constant 0 : i32
    %c0_i32_0 = arith.constant 0 : i32
    return %c0_i32, %arg1 : i32, i32
  }
  func.func @transform_3(%arg0: i32, %arg1: i32) -> (i32, i32) {
    %c0_i32 = arith.constant 0 : i32
    %c0_i32_0 = arith.constant 0 : i32
    return %arg1, %c0_i32 : i32, i32
  }
  func.func @transform_4(%arg0: i32, %arg1: i32) -> (i32, i32) {
    %c0_i32 = arith.constant 0 : i32
    %c0_i32_0 = arith.constant 0 : i32
    %c0_i32_1 = arith.constant 0 : i32
    return %c0_i32, %c0_i32_0 : i32, i32
  }
  func.func @transform_5(%arg0: i32, %arg1: i32) -> (i32, i32) {
    %c0_i32 = arith.constant 0 : i32
    %c0_i32_0 = arith.constant 0 : i32
    return %arg0, %c0_i32 : i32, i32
  }
}

</mosaic_0001>

<llo_original>
// kernel: tpu_custom_call.1
$region0: #{tpu_custom_call.1}
  #allocation0 [shape = 'u32[]', space=smem, size = 0x4, offset = 0x4, fixed_abs, tag = 'smem constant byte address 0x4 - core index']
  #allocation1 [shape = 'u32[144,128]{1,0:T(1,128)}', space=vmem, size = 0x12000, scoped, tag = 'internal scratch']
  %s0 = inlined_call_operand.hbm [shape: f32[16,256], index: 0, kind: input, shape index: {}]
  %s1 = inlined_call_operand.hbm [shape: f32[256,256], index: 1, kind: input, shape index: {}]
  %s2 = inlined_call_operand.vmem [shape: f32[1,256], index: 2, kind: input, shape index: {}]
  %s3 = inlined_call_operand.hbm [shape: f32[256,256], index: 3, kind: input, shape index: {}]
  %s4 = inlined_call_operand.vmem [shape: f32[1,256], index: 4, kind: input, shape index: {}]
  %s5 = inlined_call_operand.hbm [shape: f32[16,256], index: 5, kind: output, shape index: {}]
  %s6 = sld [smem:[#allocation0]]
  $region50: #{tpu_custom_call.1} parent=0
    _
  %s8 = ssub.s32 1, %s6
  %s9 = scalar_select 0, %s8, %s6
  $region1: #{tpu_custom_call.1} parent=0
    #allocation2 [shape = 'u8[16384]{0}', space=vmem, size = 0x4000, scoped, tag = 'input window, operand 0, single buffered']
    #allocation3 [shape = 's32[1]{0}', space=sflag, size = 0x4, scoped, tag = 'scoped memory for tpu_custom_call.1']
    #allocation4 [shape = 's32[1]{0}', space=sflag, size = 0x4, scoped, tag = 'scoped memory for tpu_custom_call.1']
    #allocation5 [shape = 'u8[262144]{0}', space=vmem, size = 0x40000, scoped, tag = 'input window, operand 1, single buffered']
    #allocation6 [shape = 's32[1]{0}', space=sflag, size = 0x4, scoped, tag = 'scoped memory for tpu_custom_call.1']
    #allocation7 [shape = 'u8[262144]{0}', space=vmem, size = 0x40000, scoped, tag = 'input window, operand 3, single buffered']
    #allocation8 [shape = 'u8[16384]{0}', space=vmem, size = 0x4000, scoped, tag = 'output window, operand 0, single buffered']
    %10 = vsyncpa [#allocation3], 0
    %11 = vsyncpa [#allocation6], 0
    %12 = vsyncpa [#allocation4], 0
    // Predicated region
    $region2: #{tpu_custom_call.1} parent=1 // pred_check
      _
    $region3: #{tpu_custom_call.1} parent=1 // pred_check_branch
      %14 = sbr.rel (0) target = $region5
    $region4: #{tpu_custom_call.1} parent=1 // pred_region
      %s16 = ssub.s32 512, 512
      %17 = vsyncadd [#allocation3], %s16
      %s18 = sshll.u32 [#allocation2], 4
      %s19 = int_to_ptr.vmem [resolvable:$true] %s18
      %24 = dma.hbm_to_vmem [thread:$0]  %s0, 512, %s19, [#allocation3], 256, 256, 16
    $region5: #{tpu_custom_call.1} parent=1 // pred_fallthru
      _
    // Predicated region
    $region6: #{tpu_custom_call.1} parent=1 // pred_check
      _
    $region7: #{tpu_custom_call.1} parent=1 // pred_check_branch
      %26 = sbr.rel (0) target = $region9
    $region8: #{tpu_custom_call.1} parent=1 // pred_region
      %s28 = ssub.s32 8192, 8192
      %29 = vsyncadd [#allocation6], %s28
      %s30 = sshll.u32 [#allocation5], 4
      %s31 = int_to_ptr.vmem [resolvable:$true] %s30
      %36 = dma.hbm_to_vmem [thread:$0]  %s1, 8192, %s31, [#allocation6], 256, 256, 16
    $region9: #{tpu_custom_call.1} parent=1 // pred_fallthru
      _
    // Predicated region
    $region10: #{tpu_custom_call.1} parent=1 // pred_check
      _
    $region11: #{tpu_custom_call.1} parent=1 // pred_check_branch
      %38 = sbr.rel (0) target = $region13
    $region12: #{tpu_custom_call.1} parent=1 // pred_region
      _
    $region13: #{tpu_custom_call.1} parent=1 // pred_fallthru
      _
    // Predicated region
    $region14: #{tpu_custom_call.1} parent=1 // pred_check
      _
    $region15: #{tpu_custom_call.1} parent=1 // pred_check_branch
      %40 = sbr.rel (0) target = $region17
    $region16: #{tpu_custom_call.1} parent=1 // pred_region
      %s42 = ssub.s32 8192, 8192
      %43 = vsyncadd [#allocation6], %s42
      %s44 = sshll.u32 [#allocation7], 4
      %s45 = int_to_ptr.vmem [resolvable:$true] %s44
      %50 = dma.hbm_to_vmem [thread:$0]  %s3, 8192, %s45, [#allocation6], 256, 256, 16
    $region17: #{tpu_custom_call.1} parent=1 // pred_fallthru
      _
    // Predicated region
    $region18: #{tpu_custom_call.1} parent=1 // pred_check
      _
    $region19: #{tpu_custom_call.1} parent=1 // pred_check_branch
      %52 = sbr.rel (0) target = $region21
    $region20: #{tpu_custom_call.1} parent=1 // pred_region
      _
    $region21: #{tpu_custom_call.1} parent=1 // pred_fallthru
      _
    // Predicated region
    $region22: #{tpu_custom_call.1} parent=1 // pred_check
      _
    $region23: #{tpu_custom_call.1} parent=1 // pred_check_branch
      %54 = sbr.rel (0) target = $region25
    $region24: #{tpu_custom_call.1} parent=1 // pred_region
      %55 = dma.done [#allocation3], 512
    $region25: #{tpu_custom_call.1} parent=1 // pred_fallthru
      _
    // Predicated region
    $region26: #{tpu_custom_call.1} parent=1 // pred_check
      _
    $region27: #{tpu_custom_call.1} parent=1 // pred_check_branch
      %57 = sbr.rel (0) target = $region29
    $region28: #{tpu_custom_call.1} parent=1 // pred_region
      %58 = dma.done [#allocation6], 8192
    $region29: #{tpu_custom_call.1} parent=1 // pred_fallthru
      _
    // Predicated region
    $region30: #{tpu_custom_call.1} parent=1 // pred_check
      _
    $region31: #{tpu_custom_call.1} parent=1 // pred_check_branch
      %60 = sbr.rel (0) target = $region33
    $region32: #{tpu_custom_call.1} parent=1 // pred_region
      %61 = dma.done [#allocation6], 8192
    $region33: #{tpu_custom_call.1} parent=1 // pred_fallthru
      _
    %p62 = scmp.eq.s32.totalorder 0, 0
    // Predicated region
    $region34: #{tpu_custom_call.1} parent=1 // pred_check
      %p63 = pneg %p62
    $region35: #{tpu_custom_call.1} parent=1 // pred_check_branch
      %65 = sbr.rel (%p63) target = $region37
    $region36: #{tpu_custom_call.1} parent=1 // pred_region
      %66 = vst [vmem:[#allocation8] sm:$0xff] 0.0
      %67 = vst [vmem:[#allocation8 + $0x8] sm:$0xff] 0.0
      %68 = vst [vmem:[#allocation8 + $0x10] sm:$0xff] 0.0
      %69 = vst [vmem:[#allocation8 + $0x18] sm:$0xff] 0.0
    $region37: #{tpu_custom_call.1} parent=1 // pred_fallthru
      _
    %v70 = vld [vmem:[#allocation2] sm:$0xff]
    %v71 = vld [vmem:[#allocation2 + $0x8] sm:$0xff]
    %v72 = vld [vmem:[#allocation2 + $0x10] sm:$0xff]
    %v73 = vld [vmem:[#allocation2 + $0x18] sm:$0xff]
    %v74 = vld [vmem:[#allocation5] sm:$0xff]
    %v75 = vld [vmem:[#allocation5 + $0x8] sm:$0xff]
    %v76 = vld [vmem:[#allocation5 + $0x10] sm:$0xff]
    %v77 = vld [vmem:[#allocation5 + $0x18] sm:$0xff]
    %v78 = vld [vmem:[#allocation5 + $0x20] sm:$0xff]
    %v79 = vld [vmem:[#allocation5 + $0x28] sm:$0xff]
    %v80 = vld [vmem:[#allocation5 + $0x30] sm:$0xff]
    %v81 = vld [vmem:[#allocation5 + $0x38] sm:$0xff]
    %v82 = vld [vmem:[#allocation5 + $0x40] sm:$0xff]
    %v83 = vld [vmem:[#allocation5 + $0x48] sm:$0xff]
    %v84 = vld [vmem:[#allocation5 + $0x50] sm:$0xff]
    %v85 = vld [vmem:[#allocation5 + $0x58] sm:$0xff]
    %v86 = vld [vmem:[#allocation5 + $0x60] sm:$0xff]
    %v87 = vld [vmem:[#allocation5 + $0x68] sm:$0xff]
    %v88 = vld [vmem:[#allocation5 + $0x70] sm:$0xff]
    %v89 = vld [vmem:[#allocation5 + $0x78] sm:$0xff]
    %v90 = vld [vmem:[#allocation5 + $0x80] sm:$0xff]
    %v91 = vld [vmem:[#allocation5 + $0x88] sm:$0xff]
    %v92 = vld [vmem:[#allocation5 + $0x90] sm:$0xff]
    %v93 = vld [vmem:[#allocation5 + $0x98] sm:$0xff]
    %v94 = vld [vmem:[#allocation5 + $0xa0] sm:$0xff]
    %v95 = vld [vmem:[#allocation5 + $0xa8] sm:$0xff]
    %v96 = vld [vmem:[#allocation5 + $0xb0] sm:$0xff]
    %v97 = vld [vmem:[#allocation5 + $0xb8] sm:$0xff]
    %v98 = vld [vmem:[#allocation5 + $0xc0] sm:$0xff]
    %v99 = vld [vmem:[#allocation5 + $0xc8] sm:$0xff]
    %v100 = vld [vmem:[#allocation5 + $0xd0] sm:$0xff]
    %v101 = vld [vmem:[#allocation5 + $0xd8] sm:$0xff]
    %v102 = vld [vmem:[#allocation5 + $0xe0] sm:$0xff]
    %v103 = vld [vmem:[#allocation5 + $0xe8] sm:$0xff]
    %v104 = vld [vmem:[#allocation5 + $0xf0] sm:$0xff]
    %v105 = vld [vmem:[#allocation5 + $0xf8] sm:$0xff]
    %v106 = vld [vmem:[#allocation5 + $0x100] sm:$0xff]
    %v107 = vld [vmem:[#allocation5 + $0x108] sm:$0xff]
    %v108 = vld [vmem:[#allocation5 + $0x110] sm:$0xff]
    %v109 = vld [vmem:[#allocation5 + $0x118] sm:$0xff]
    %v110 = vld [vmem:[#allocation5 + $0x120] sm:$0xff]
    %v111 = vld [vmem:[#allocation5 + $0x128] sm:$0xff]
    %v112 = vld [vmem:[#allocation5 + $0x130] sm:$0xff]
    %v113 = vld [vmem:[#allocation5 + $0x138] sm:$0xff]
    %v114 = vld [vmem:[#allocation5 + $0x140] sm:$0xff]
    %v115 = vld [vmem:[#allocation5 + $0x148] sm:$0xff]
    %v116 = vld [vmem:[#allocation5 + $0x150] sm:$0xff]
    %v117 = vld [vmem:[#allocation5 + $0x158] sm:$0xff]
    %v118 = vld [vmem:[#allocation5 + $0x160] sm:$0xff]
    %v119 = vld [vmem:[#allocation5 + $0x168] sm:$0xff]
    %v120 = vld [vmem:[#allocation5 + $0x170] sm:$0xff]
    %v121 = vld [vmem:[#allocation5 + $0x178] sm:$0xff]
    %v122 = vld [vmem:[#allocation5 + $0x180] sm:$0xff]
    %v123 = vld [vmem:[#allocation5 + $0x188] sm:$0xff]
    %v124 = vld [vmem:[#allocation5 + $0x190] sm:$0xff]
    %v125 = vld [vmem:[#allocation5 + $0x198] sm:$0xff]
    %v126 = vld [vmem:[#allocation5 + $0x1a0] sm:$0xff]
    %v127 = vld [vmem:[#allocation5 + $0x1a8] sm:$0xff]
    %v128 = vld [vmem:[#allocation5 + $0x1b0] sm:$0xff]
    %v129 = vld [vmem:[#allocation5 + $0x1b8] sm:$0xff]
    %v130 = vld [vmem:[#allocation5 + $0x1c0] sm:$0xff]
    %v131 = vld [vmem:[#allocation5 + $0x1c8] sm:$0xff]
    %v132 = vld [vmem:[#allocation5 + $0x1d0] sm:$0xff]
    %v133 = vld [vmem:[#allocation5 + $0x1d8] sm:$0xff]
    %v134 = vld [vmem:[#allocation5 + $0x1e0] sm:$0xff]
    %v135 = vld [vmem:[#allocation5 + $0x1e8] sm:$0xff]
    %v136 = vld [vmem:[#allocation5 + $0x1f0] sm:$0xff]
    %v137 = vld [vmem:[#allocation5 + $0x1f8] sm:$0xff]
    %v138 = vld [vmem:[%s2] sm:$0x3]
    %v140 = vlaneseq
    %v141 = vshrl.u32 %v140, 7
    %v142 = vsub.s32 0, %v141
    %v143 = vrot.slane %v138, %v142
    %v144 = vlaneseq
    %v145 = vshrl.u32 %v144, 7
    %v146 = vsub.s32 1, %v145
    %v147 = vrot.slane %v138, %v146
    %150 = vmatprep.subr.mxu0 %v75
    %151 = vmatpush1.msra.mxu0 %v74
    %152 = vmatprep.subr.mxu0 %v77
    %153 = vmatpush1.msra.mxu0 %v76
    %154 = vmatprep.subr.mxu0 %v79
    %155 = vmatpush1.msra.mxu0 %v78
    %156 = vmatprep.subr.mxu0 %v81
    %157 = vmatpush1.msra.mxu0 %v80
    %158 = vmatprep.subr.mxu0 %v83
    %159 = vmatpush1.msra.mxu0 %v82
    %160 = vmatprep.subr.mxu0 %v85
    %161 = vmatpush1.msra.mxu0 %v84
    %162 = vmatprep.subr.mxu0 %v87
    %163 = vmatpush1.msra.mxu0 %v86
    %164 = vmatprep.subr.mxu0 %v89
    %165 = vmatpush1.msra.mxu0 %v88
    %166 = vmatprep.subr.mxu0 %v91
    %167 = vmatpush1.msra.mxu0 %v90
    %168 = vmatprep.subr.mxu0 %v93
    %169 = vmatpush1.msra.mxu0 %v92
    %170 = vmatprep.subr.mxu0 %v95
    %171 = vmatpush1.msra.mxu0 %v94
    %172 = vmatprep.subr.mxu0 %v97
    %173 = vmatpush1.msra.mxu0 %v96
    %174 = vmatprep.subr.mxu0 %v99
    %175 = vmatpush1.msra.mxu0 %v98
    %176 = vmatprep.subr.mxu0 %v101
    %177 = vmatpush1.msra.mxu0 %v100
    %178 = vmatprep.subr.mxu0 %v103
    %179 = vmatpush1.msra.mxu0 %v102
    %180 = vmatprep.subr.mxu0 %v105
    %181 = vmatpush1.msra.mxu0 %v104
    %182 = vmatprep.subr.mxu0 %v107
    %183 = vmatpush1.msra.mxu0 %v106
    %184 = vmatprep.subr.mxu0 %v109
    %185 = vmatpush1.msra.mxu0 %v108
    %186 = vmatprep.subr.mxu0 %v111
    %187 = vmatpush1.msra.mxu0 %v110
    %188 = vmatprep.subr.mxu0 %v113
    %189 = vmatpush1.msra.mxu0 %v112
    %190 = vmatprep.subr.mxu0 %v115
    %191 = vmatpush1.msra.mxu0 %v114
    %192 = vmatprep.subr.mxu0 %v117
    %193 = vmatpush1.msra.mxu0 %v116
    %194 = vmatprep.subr.mxu0 %v119
    %195 = vmatpush1.msra.mxu0 %v118
    %196 = vmatprep.subr.mxu0 %v121
    %197 = vmatpush1.msra.mxu0 %v120
    %198 = vmatprep.subr.mxu0 %v123
    %199 = vmatpush1.msra.mxu0 %v122
    %200 = vmatprep.subr.mxu0 %v125
    %201 = vmatpush1.msra.mxu0 %v124
    %202 = vmatprep.subr.mxu0 %v127
    %203 = vmatpush1.msra.mxu0 %v126
    %204 = vmatprep.subr.mxu0 %v129
    %205 = vmatpush1.msra.mxu0 %v128
    %206 = vmatprep.subr.mxu0 %v131
    %207 = vmatpush1.msra.mxu0 %v130
    %208 = vmatprep.subr.mxu0 %v133
    %209 = vmatpush1.msra.mxu0 %v132
    %210 = vmatprep.subr.mxu0 %v135
    %211 = vmatpush1.msra.mxu0 %v134
    %212 = vmatprep.subr.mxu0 %v137
    %213 = vmatpush1.msra.mxu0 %v136
    %214 = vmatprep.mubr.f32.mxu0 %v71
    %215 = vmatmul.mubr.f32.gmra.mrb[0].mxu0 %v70
    %v216 = vpop.f32.mrb[0].mxu0
    %v217 = vadd.f32 %v143, %v216
    %v218 = vpop.f32.mrb[0].mxu0
    %v219 = vadd.f32 %v147, %v218
    %220 = vmatprep.mubr.f32.mxu0 %v73
    %221 = vmatmul.mubr.f32.gmra.mrb[0].mxu0 %v72
    %v222 = vpop.f32.mrb[0].mxu0
    %v223 = vadd.f32 %v143, %v222
    %v224 = vpop.f32.mrb[0].mxu0
    %v225 = vadd.f32 %v147, %v224
    %226 = vdwg.mxu0
    %v227 = vmax.f32 %v217, 0.0
    %v228 = vmax.f32 %v219, 0.0
    %v229 = vmax.f32 %v223, 0.0
    %v230 = vmax.f32 %v225, 0.0
    %v231 = vld [vmem:[#allocation8] sm:$0xff]
    %v232 = vld [vmem:[#allocation8 + $0x8] sm:$0xff]
    %v233 = vld [vmem:[#allocation8 + $0x10] sm:$0xff]
    %v234 = vld [vmem:[#allocation8 + $0x18] sm:$0xff]
    %v235 = vld [vmem:[#allocation7] sm:$0xff]
    %v236 = vld [vmem:[#allocation7 + $0x8] sm:$0xff]
    %v237 = vld [vmem:[#allocation7 + $0x10] sm:$0xff]
    %v238 = vld [vmem:[#allocation7 + $0x18] sm:$0xff]
    %v239 = vld [vmem:[#allocation7 + $0x20] sm:$0xff]
    %v240 = vld [vmem:[#allocation7 + $0x28] sm:$0xff]
    %v241 = vld [vmem:[#allocation7 + $0x30] sm:$0xff]
    %v242 = vld [vmem:[#allocation7 + $0x38] sm:$0xff]
    %v243 = vld [vmem:[#allocation7 + $0x40] sm:$0xff]
    %v244 = vld [vmem:[#allocation7 + $0x48] sm:$0xff]
    %v245 = vld [vmem:[#allocation7 + $0x50] sm:$0xff]
    %v246 = vld [vmem:[#allocation7 + $0x58] sm:$0xff]
    %v247 = vld [vmem:[#allocation7 + $0x60] sm:$0xff]
    %v248 = vld [vmem:[#allocation7 + $0x68] sm:$0xff]
    %v249 = vld [vmem:[#allocation7 + $0x70] sm:$0xff]
    %v250 = vld [vmem:[#allocation7 + $0x78] sm:$0xff]
    %v251 = vld [vmem:[#allocation7 + $0x80] sm:$0xff]
    %v252 = vld [vmem:[#allocation7 + $0x88] sm:$0xff]
    %v253 = vld [vmem:[#allocation7 + $0x90] sm:$0xff]
    %v254 = vld [vmem:[#allocation7 + $0x98] sm:$0xff]
    %v255 = vld [vmem:[#allocation7 + $0xa0] sm:$0xff]
    %v256 = vld [vmem:[#allocation7 + $0xa8] sm:$0xff]
    %v257 = vld [vmem:[#allocation7 + $0xb0] sm:$0xff]
    %v258 = vld [vmem:[#allocation7 + $0xb8] sm:$0xff]
    %v259 = vld [vmem:[#allocation7 + $0xc0] sm:$0xff]
    %v260 = vld [vmem:[#allocation7 + $0xc8] sm:$0xff]
    %v261 = vld [vmem:[#allocation7 + $0xd0] sm:$0xff]
    %v262 = vld [vmem:[#allocation7 + $0xd8] sm:$0xff]
    %v263 = vld [vmem:[#allocation7 + $0xe0] sm:$0xff]
    %v264 = vld [vmem:[#allocation7 + $0xe8] sm:$0xff]
    %v265 = vld [vmem:[#allocation7 + $0xf0] sm:$0xff]
    %v266 = vld [vmem:[#allocation7 + $0xf8] sm:$0xff]
    %v267 = vld [vmem:[#allocation7 + $0x100] sm:$0xff]
    %v268 = vld [vmem:[#allocation7 + $0x108] sm:$0xff]
    %v269 = vld [vmem:[#allocation7 + $0x110] sm:$0xff]
    %v270 = vld [vmem:[#allocation7 + $0x118] sm:$0xff]
    %v271 = vld [vmem:[#allocation7 + $0x120] sm:$0xff]
    %v272 = vld [vmem:[#allocation7 + $0x128] sm:$0xff]
    %v273 = vld [vmem:[#allocation7 + $0x130] sm:$0xff]
    %v274 = vld [vmem:[#allocation7 + $0x138] sm:$0xff]
    %v275 = vld [vmem:[#allocation7 + $0x140] sm:$0xff]
    %v276 = vld [vmem:[#allocation7 + $0x148] sm:$0xff]
    %v277 = vld [vmem:[#allocation7 + $0x150] sm:$0xff]
    %v278 = vld [vmem:[#allocation7 + $0x158] sm:$0xff]
    %v279 = vld [vmem:[#allocation7 + $0x160] sm:$0xff]
    %v280 = vld [vmem:[#allocation7 + $0x168] sm:$0xff]
    %v281 = vld [vmem:[#allocation7 + $0x170] sm:$0xff]
    %v282 = vld [vmem:[#allocation7 + $0x178] sm:$0xff]
    %v283 = vld [vmem:[#allocation7 + $0x180] sm:$0xff]
    %v284 = vld [vmem:[#allocation7 + $0x188] sm:$0xff]
    %v285 = vld [vmem:[#allocation7 + $0x190] sm:$0xff]
    %v286 = vld [vmem:[#allocation7 + $0x198] sm:$0xff]
    %v287 = vld [vmem:[#allocation7 + $0x1a0] sm:$0xff]
    %v288 = vld [vmem:[#allocation7 + $0x1a8] sm:$0xff]
    %v289 = vld [vmem:[#allocation7 + $0x1b0] sm:$0xff]
    %v290 = vld [vmem:[#allocation7 + $0x1b8] sm:$0xff]
    %v291 = vld [vmem:[#allocation7 + $0x1c0] sm:$0xff]
    %v292 = vld [vmem:[#allocation7 + $0x1c8] sm:$0xff]
    %v293 = vld [vmem:[#allocation7 + $0x1d0] sm:$0xff]
    %v294 = vld [vmem:[#allocation7 + $0x1d8] sm:$0xff]
    %v295 = vld [vmem:[#allocation7 + $0x1e0] sm:$0xff]
    %v296 = vld [vmem:[#allocation7 + $0x1e8] sm:$0xff]
    %v297 = vld [vmem:[#allocation7 + $0x1f0] sm:$0xff]
    %v298 = vld [vmem:[#allocation7 + $0x1f8] sm:$0xff]
    %299 = vmatprep.subr.mxu0 %v236
    %300 = vmatpush1.msra.mxu0 %v235
    %301 = vmatprep.subr.mxu0 %v238
    %302 = vmatpush1.msra.mxu0 %v237
    %303 = vmatprep.subr.mxu0 %v240
    %304 = vmatpush1.msra.mxu0 %v239
    %305 = vmatprep.subr.mxu0 %v242
    %306 = vmatpush1.msra.mxu0 %v241
    %307 = vmatprep.subr.mxu0 %v244
    %308 = vmatpush1.msra.mxu0 %v243
    %309 = vmatprep.subr.mxu0 %v246
    %310 = vmatpush1.msra.mxu0 %v245
    %311 = vmatprep.subr.mxu0 %v248
    %312 = vmatpush1.msra.mxu0 %v247
    %313 = vmatprep.subr.mxu0 %v250
    %314 = vmatpush1.msra.mxu0 %v249
    %315 = vmatprep.subr.mxu0 %v252
    %316 = vmatpush1.msra.mxu0 %v251
    %317 = vmatprep.subr.mxu0 %v254
    %318 = vmatpush1.msra.mxu0 %v253
    %319 = vmatprep.subr.mxu0 %v256
    %320 = vmatpush1.msra.mxu0 %v255
    %321 = vmatprep.subr.mxu0 %v258
    %322 = vmatpush1.msra.mxu0 %v257
    %323 = vmatprep.subr.mxu0 %v260
    %324 = vmatpush1.msra.mxu0 %v259
    %325 = vmatprep.subr.mxu0 %v262
    %326 = vmatpush1.msra.mxu0 %v261
    %327 = vmatprep.subr.mxu0 %v264
    %328 = vmatpush1.msra.mxu0 %v263
    %329 = vmatprep.subr.mxu0 %v266
    %330 = vmatpush1.msra.mxu0 %v265
    %331 = vmatprep.subr.mxu0 %v268
    %332 = vmatpush1.msra.mxu0 %v267
    %333 = vmatprep.subr.mxu0 %v270
    %334 = vmatpush1.msra.mxu0 %v269
    %335 = vmatprep.subr.mxu0 %v272
    %336 = vmatpush1.msra.mxu0 %v271
    %337 = vmatprep.subr.mxu0 %v274
    %338 = vmatpush1.msra.mxu0 %v273
    %339 = vmatprep.subr.mxu0 %v276
    %340 = vmatpush1.msra.mxu0 %v275
    %341 = vmatprep.subr.mxu0 %v278
    %342 = vmatpush1.msra.mxu0 %v277
    %343 = vmatprep.subr.mxu0 %v280
    %344 = vmatpush1.msra.mxu0 %v279
    %345 = vmatprep.subr.mxu0 %v282
    %346 = vmatpush1.msra.mxu0 %v281
    %347 = vmatprep.subr.mxu0 %v284
    %348 = vmatpush1.msra.mxu0 %v283
    %349 = vmatprep.subr.mxu0 %v286
    %350 = vmatpush1.msra.mxu0 %v285
    %351 = vmatprep.subr.mxu0 %v288
    %352 = vmatpush1.msra.mxu0 %v287
    %353 = vmatprep.subr.mxu0 %v290
    %354 = vmatpush1.msra.mxu0 %v289
    %355 = vmatprep.subr.mxu0 %v292
    %356 = vmatpush1.msra.mxu0 %v291
    %357 = vmatprep.subr.mxu0 %v294
    %358 = vmatpush1.msra.mxu0 %v293
    %359 = vmatprep.subr.mxu0 %v296
    %360 = vmatpush1.msra.mxu0 %v295
    %361 = vmatprep.subr.mxu0 %v298
    %362 = vmatpush1.msra.mxu0 %v297
    %363 = vmatprep.mubr.f32.mxu0 %v228
    %364 = vmatmul.mubr.f32.gmra.mrb[0].mxu0 %v227
    %v365 = vpop.f32.mrb[0].mxu0
    %v366 = vadd.f32 0.0, %v365
    %v367 = vpop.f32.mrb[0].mxu0
    %v368 = vadd.f32 0.0, %v367
    %369 = vmatprep.mubr.f32.mxu0 %v230
    %370 = vmatmul.mubr.f32.gmra.mrb[0].mxu0 %v229
    %v371 = vpop.f32.mrb[0].mxu0
    %v372 = vadd.f32 0.0, %v371
    %v373 = vpop.f32.mrb[0].mxu0
    %v374 = vadd.f32 0.0, %v373
    %375 = vdwg.mxu0
    %v376 = vadd.f32 %v231, %v366
    %v377 = vadd.f32 %v232, %v368
    %v378 = vadd.f32 %v233, %v372
    %v379 = vadd.f32 %v234, %v374
    %380 = vst [vmem:[#allocation8] sm:$0xff] %v376
    %381 = vst [vmem:[#allocation8 + $0x8] sm:$0xff] %v377
    %382 = vst [vmem:[#allocation8 + $0x10] sm:$0xff] %v378
    %383 = vst [vmem:[#allocation8 + $0x18] sm:$0xff] %v379
    // Predicated region
    $region38: #{tpu_custom_call.1} parent=1 // pred_check
      %p384 = pneg %p62
    $region39: #{tpu_custom_call.1} parent=1 // pred_check_branch
      %386 = sbr.rel (%p384) target = $region41
    $region40: #{tpu_custom_call.1} parent=1 // pred_region
      %v387 = vld [vmem:[#allocation8] sm:$0xff]
      %v388 = vld [vmem:[#allocation8 + $0x8] sm:$0xff]
      %v389 = vld [vmem:[#allocation8 + $0x10] sm:$0xff]
      %v390 = vld [vmem:[#allocation8 + $0x18] sm:$0xff]
      %v391 = vld [vmem:[%s4] sm:$0x3]
      %v393 = vlaneseq
      %v394 = vshrl.u32 %v393, 7
      %v395 = vsub.s32 0, %v394
      %v396 = vrot.slane %v391, %v395
      %v397 = vlaneseq
      %v398 = vshrl.u32 %v397, 7
      %v399 = vsub.s32 1, %v398
      %v400 = vrot.slane %v391, %v399
      %v403 = vadd.f32 %v387, %v396
      %v404 = vadd.f32 %v388, %v400
      %v405 = vadd.f32 %v389, %v396
      %v406 = vadd.f32 %v390, %v400
      %v407 = vmax.f32 %v403, 0.0
      %v408 = vmax.f32 %v404, 0.0
      %v409 = vmax.f32 %v405, 0.0
      %v410 = vmax.f32 %v406, 0.0
      %411 = vst [vmem:[#allocation8] sm:$0xff] %v407
      %412 = vst [vmem:[#allocation8 + $0x8] sm:$0xff] %v408
      %413 = vst [vmem:[#allocation8 + $0x10] sm:$0xff] %v409
      %414 = vst [vmem:[#allocation8 + $0x18] sm:$0xff] %v410
    $region41: #{tpu_custom_call.1} parent=1 // pred_fallthru
      _
    // Predicated region
    $region42: #{tpu_custom_call.1} parent=1 // pred_check
      _
    $region43: #{tpu_custom_call.1} parent=1 // pred_check_branch
      %416 = sbr.rel (0) target = $region45
    $region44: #{tpu_custom_call.1} parent=1 // pred_region
      %s418 = ssub.s32 512, 512
      %419 = vsyncadd [#allocation4], %s418
      %s420 = sshll.u32 [#allocation8], 4
      %s421 = int_to_ptr.vmem [resolvable:$true] %s420
      %426 = dma.vmem_to_hbm [thread:$0]  %s421, 512, %s5, [#allocation4], 256, 256, 16
    $region45: #{tpu_custom_call.1} parent=1 // pred_fallthru
      _
    // Predicated region
    $region46: #{tpu_custom_call.1} parent=1 // pred_check
      _
    $region47: #{tpu_custom_call.1} parent=1 // pred_check_branch
      %428 = sbr.rel (0) target = $region49
    $region48: #{tpu_custom_call.1} parent=1 // pred_region
      %429 = dma.done [#allocation4], 512
    $region49: #{tpu_custom_call.1} parent=1 // pred_fallthru
      _
    %430 = vsyncpa [#allocation3], 1
    %431 = vsyncpa [#allocation6], 1
    %432 = vsyncpa [#allocation4], 1

</llo_original>
